<compile_context>
chip_gen: v6e
topology: v6e:2x2x1
jax: 0.10.0
libtpu: 0.0.40
codegen_flags: <defaults>
</compile_context>

<pallas_src>
import jax
import jax.numpy as jnp
from jax.experimental import pallas as pl
from jax.experimental.pallas import tpu as pltpu

EPS = 1e-5


def _round_up(x, m):
    return ((x + m - 1) // m) * m


def _make_pass1_kernel(t_h, w_out, h_out, n_t, tm_rows, c_pad):
    """conv (3 kh-tap matmuls) + bias + ReLU; bf16 y; per-tile sum/sumsq."""

    def kernel(xp_ref, w_ref, b_ref, y_ref, stats_ref):
        t = pl.program_id(1)

        # 3x3 stride-2 conv: kw taps are pre-folded into the contraction dim
        # by the wrapper; the 3 kh taps are contiguous slices of the even/odd
        # row-parity planes.  bf16 x bf16 -> f32 MXU accumulation.
        acc = jnp.zeros((tm_rows, c_pad), jnp.float32)
        for kh in range(3):
            plane = kh % 2                      # even/odd input-row parity
            dh = kh // 2                        # +1 output-row shift for kh=2
            start = (t * t_h + dh) * w_out
            tap = xp_ref[0, plane, pl.ds(start, tm_rows), :]
            acc = acc + jnp.dot(tap, w_ref[kh],
                                preferred_element_type=jnp.float32)

        y = jnp.maximum(acc + b_ref[...], 0.0)  # bias + ReLU (f32 VPU)
        y_ref[0] = y.astype(y_ref.dtype)        # bf16 writeback

        # Per-tile partial sums (reduced in the wrapper) -> both grid axes
        # stay "parallel" (megacore-shardable).  Stats use the f32 pre-cast y.
        def write_stats(vals):
            stats_ref[0, 0:1, :] = jnp.sum(vals, axis=0, keepdims=True)
            stats_ref[0, 1:2, :] = jnp.sum(vals * vals, axis=0, keepdims=True)

        is_last = t == (n_t - 1)

        @pl.when(jnp.logical_not(is_last))
        def _():
            write_stats(y)

        @pl.when(is_last)                       # only tile with padded rows
        def _():
            limit = (h_out - t * t_h) * w_out
            rows = jax.lax.broadcasted_iota(jnp.int32, (tm_rows, 1), 0)
            write_stats(jnp.where(rows < limit, y, 0.0))

    return kernel


def _pass2_kernel(y_ref, sc_ref, sh_ref, o_ref):
    """Streaming BN apply: scale/shift are precomputed in the wrapper."""
    o_ref[0] = y_ref[0].astype(jnp.float32) * sc_ref[...] + sh_ref[...]


def downsample_block(x_nchw, w_oihw, b, gamma, beta, *, tile_rows=1024):
    """x_nchw: (N, C_in, H, W) f32; w_oihw: (C_out, C_in, 3, 3) f32."""
    N, C_in, H, W = x_nchw.shape
    C_out = w_oihw.shape[0]
    H_out = (H - 1) // 2 + 1                    # stride 2, pad 1, k 3
    W_out = (W - 1) // 2 + 1
    M_true = N * H_out * W_out

    # Output-row tiling: ~tile_rows flattened (h, w) rows per grid step.
    t_h = max(1, min(H_out, tile_rows // max(W_out, 1)))
    h_out_pad = _round_up(H_out, t_h)
    n_t = h_out_pad // t_h
    tm_rows = t_h * W_out

    K3 = 3 * C_in
    K3_pad = _round_up(K3, 128)                 # lane-dense MXU contraction
    C_pad = _round_up(C_out, 128)               # lane-dense output stores

    # ---- glue: NCHW->NHWC bf16, pad, width-im2col (stride 2), parity split --
    x = jnp.transpose(x_nchw, (0, 2, 3, 1)).astype(jnp.bfloat16)
    H_p = 2 * h_out_pad + 1
    W_p = 2 * W_out + 1
    x_p = jnp.pad(x, ((0, 0), (1, H_p - 1 - H), (1, W_p - 1 - W), (0, 0)))
    # width taps folded into channels: xw[..., kw*C_in + c] = x_p[:, :, 2*ow+kw, c]
    xw = jnp.concatenate(
        [x_p[:, :, kw:kw + 2 * W_out:2, :] for kw in range(3)], axis=-1)
    # split rows by parity -> planes (even, odd); flatten (h, w) per plane
    xw = jnp.pad(xw, ((0, 0), (0, 1), (0, 0), (0, 0)))      # rows -> even count
    h_half = h_out_pad + 1
    xw = xw.reshape(N, h_half, 2, W_out, K3).transpose(0, 2, 1, 3, 4)
    x_planes = jnp.pad(xw.reshape(N, 2, h_half * W_out, K3),
                       ((0, 0), (0, 0), (0, 0), (0, K3_pad - K3)))

    # weights: (C_out, C_in, kh, kw) -> (kh, kw*C_in, C_out), pad, bf16
    w3 = jnp.transpose(w_oihw, (2, 3, 1, 0)).reshape(3, K3, C_out)
    w3 = jnp.pad(w3.astype(jnp.bfloat16),
                 ((0, 0), (0, K3_pad - K3), (0, C_pad - C_out)))
    b2 = jnp.pad(b.astype(jnp.float32).reshape(1, C_out),
                 ((0, 0), (0, C_pad - C_out)))
    g2 = jnp.pad(gamma.astype(jnp.float32).reshape(1, C_out),
                 ((0, 0), (0, C_pad - C_out)))
    be2 = jnp.pad(beta.astype(jnp.float32).reshape(1, C_out),
                  ((0, 0), (0, C_pad - C_out)))

    # Per-generation VMEM budget: ~3/4 of physical, never 100%.
    try:
        vmem_cap = pltpu.get_tpu_info().vmem_capacity_bytes
    except Exception:
        vmem_cap = 64 << 20
    vmem_limit = min(int(vmem_cap * 3 // 4), 100 << 20)

    n_blocks = N * n_t

    # ---- pass 1: fused conv + bias + ReLU, bf16 y, per-tile stats ----
    y, stats = pl.pallas_call(
        _make_pass1_kernel(t_h, W_out, H_out, n_t, tm_rows, C_pad),
        out_shape=(
            jax.ShapeDtypeStruct((n_blocks, tm_rows, C_pad), jnp.bfloat16),
            jax.ShapeDtypeStruct((n_blocks, 2, C_pad), jnp.float32),
        ),
        grid=(N, n_t),
        in_specs=[
            # full per-batch parity planes; block index depends only on n, so
            # the DMA is issued once per batch element and reused over t.
            pl.BlockSpec((1, 2, h_half * W_out, K3_pad),
                         lambda n, t: (n, 0, 0, 0)),
            pl.BlockSpec((3, K3_pad, C_pad), lambda n, t: (0, 0, 0)),
            pl.BlockSpec((1, C_pad), lambda n, t: (0, 0)),
        ],
        out_specs=(
            pl.BlockSpec((1, tm_rows, C_pad), lambda n, t: (n * n_t + t, 0, 0)),
            pl.BlockSpec((1, 2, C_pad), lambda n, t: (n * n_t + t, 0, 0)),
        ),
        compiler_params=pltpu.CompilerParams(
            dimension_semantics=("parallel", "parallel"),
            vmem_limit_bytes=vmem_limit,
        ),
    )(x_planes, w3, b2)

    # ---- tiny XLA glue: reduce partials, finalize BN scale/shift ----
    tot = jnp.sum(stats, axis=0)                              # (2, C_pad)
    mean = tot[0:1, :] * (1.0 / M_true)
    ex2 = tot[1:2, :] * (1.0 / M_true)
    var = jnp.maximum(ex2 - mean * mean, 0.0)                 # biased variance
    inv_std = jax.lax.rsqrt(var + EPS)
    scale = g2 * inv_std                                      # (1, C_pad)
    shift = be2 - mean * scale                                # (1, C_pad)

    # ---- pass 2: streaming y * scale + shift ----
    out3 = pl.pallas_call(
        _pass2_kernel,
        out_shape=jax.ShapeDtypeStruct((n_blocks, tm_rows, C_pad), jnp.float32),
        grid=(n_blocks,),
        in_specs=[
            pl.BlockSpec((1, tm_rows, C_pad), lambda i: (i, 0, 0)),
            pl.BlockSpec((1, C_pad), lambda i: (0, 0)),
            pl.BlockSpec((1, C_pad), lambda i: (0, 0)),
        ],
        out_specs=pl.BlockSpec((1, tm_rows, C_pad), lambda i: (i, 0, 0)),
        compiler_params=pltpu.CompilerParams(
            dimension_semantics=("parallel",),
            vmem_limit_bytes=vmem_limit,
        ),
    )(y, scale, shift)

    # ---- glue: drop padding, back to NCHW ----
    out = out3.reshape(N, h_out_pad, W_out, C_pad)[:, :H_out, :, :C_out]
    return jnp.transpose(out, (0, 3, 1, 2))


def _reference(x_nchw, w_oihw, b, gamma, beta):
    """Pure-JAX f32 reference matching the PyTorch module in training mode."""
    y = jax.lax.conv_general_dilated(
        x_nchw.astype(jnp.float32),
        w_oihw.astype(jnp.float32),
        window_strides=(2, 2),
        padding=((1, 1), (1, 1)),
        dimension_numbers=("NCHW", "OIHW", "NCHW"),
    ) + b.reshape(1, -1, 1, 1)
    y = jnp.maximum(y, 0.0)
    mean = jnp.mean(y, axis=(0, 2, 3), keepdims=True)
    var = jnp.mean((y - mean) ** 2, axis=(0, 2, 3), keepdims=True)
    return (y - mean) / jnp.sqrt(var + EPS) * gamma.reshape(1, -1, 1, 1) + beta.reshape(
        1, -1, 1, 1
    )


if __name__ == "__main__":
    key = jax.random.PRNGKey(0)
    k_x, k_w, k_b, k_g, k_be = jax.random.split(key, 5)

    N, C_in, H, W = 2, 4, 16, 16
    C_out = 8

    x = jax.random.normal(k_x, (N, C_in, H, W), dtype=jnp.float32)
    w = jax.random.normal(k_w, (C_out, C_in, 3, 3), dtype=jnp.float32) * 0.1
    b = jax.random.normal(k_b, (C_out,), dtype=jnp.float32) * 0.1
    gamma = 1.0 + 0.1 * jax.random.normal(k_g, (C_out,), dtype=jnp.float32)
    beta = 0.1 * jax.random.normal(k_be, (C_out,), dtype=jnp.float32)

    out = jax.jit(downsample_block)(x, w, b, gamma, beta)
    jax.block_until_ready(out)

    ref = _reference(x, w, b, gamma, beta)
    assert out.shape == (N, C_out, H // 2, W // 2)
    # bf16 MXU inputs + bf16 y intermediate with f32 stats -> bf16-level tol.
    assert jnp.allclose(out, ref, atol=2e-2, rtol=2e-2), float(
        jnp.max(jnp.abs(out - ref))
    )

    print("KERNEL_OK")
</pallas_src>

<mosaic_0001>
module attributes {stable_mosaic.version = 11 : i64} {
  func.func @_pass2_kernel(%arg0: i32, %arg1: memref<1x64x128xbf16, #tpu.memory_space<vmem>>, %arg2: memref<1x128xf32, #tpu.memory_space<vmem>>, %arg3: memref<1x128xf32, #tpu.memory_space<vmem>>, %arg4: memref<1x64x128xf32, #tpu.memory_space<vmem>>) attributes {dimension_semantics = [#tpu.dimension_semantics<parallel>], iteration_bounds = array<i64: 2>, scalar_prefetch = 0 : i64, scratch_operands = 0 : i64, tpu.core_type = #tpu.core_type<tc>, window_params = [{transform_indices = @transform_0, window_bounds = array<i64: 1, 64, 128>}, {pipeline_mode = #tpu.pipeline_mode<synchronous>, transform_indices = @transform_1, window_bounds = array<i64: 1, 128>}, {pipeline_mode = #tpu.pipeline_mode<synchronous>, transform_indices = @transform_2, window_bounds = array<i64: 1, 128>}, {transform_indices = @transform_3, window_bounds = array<i64: 1, 64, 128>}]} {
    %c0 = arith.constant 0 : index
    %c0_0 = arith.constant 0 : index
    %c0_1 = arith.constant 0 : index
    %0 = vector.load %arg1[%c0, %c0_0, %c0_1] : memref<1x64x128xbf16, #tpu.memory_space<vmem>>, vector<1x64x128xbf16>
    %1 = vector.shape_cast %0 : vector<1x64x128xbf16> to vector<64x128xbf16>
    %2 = arith.extf %1 : vector<64x128xbf16> to vector<64x128xf32>
    %c0_2 = arith.constant 0 : index
    %c0_3 = arith.constant 0 : index
    %3 = vector.load %arg2[%c0_2, %c0_3] : memref<1x128xf32, #tpu.memory_space<vmem>>, vector<1x128xf32>
    %4 = vector.broadcast %3 : vector<1x128xf32> to vector<64x128xf32>
    %5 = arith.mulf %2, %4 : vector<64x128xf32>
    %c0_4 = arith.constant 0 : index
    %c0_5 = arith.constant 0 : index
    %6 = vector.load %arg3[%c0_4, %c0_5] : memref<1x128xf32, #tpu.memory_space<vmem>>, vector<1x128xf32>
    %7 = vector.broadcast %6 : vector<1x128xf32> to vector<64x128xf32>
    %8 = arith.addf %5, %7 : vector<64x128xf32>
    %c0_6 = arith.constant 0 : index
    %c0_7 = arith.constant 0 : index
    %c0_8 = arith.constant 0 : index
    %9 = vector.load %arg4[%c0_6, %c0_7, %c0_8] : memref<1x64x128xf32, #tpu.memory_space<vmem>>, vector<1x64x128xf32>
    %10 = vector.shape_cast %9 : vector<1x64x128xf32> to vector<64x128xf32>
    %11 = vector.shape_cast %8 : vector<64x128xf32> to vector<1x64x128xf32>
    tpu.vector_store %arg4[%c0_6, %c0_7, %c0_8], %11 {strides = array<i32>} : memref<1x64x128xf32, #tpu.memory_space<vmem>>, vector<1x64x128xf32>,
    return
  }
  func.func @transform_0(%arg0: i32) -> (i32, i32, i32) {
    %c0_i32 = arith.constant 0 : i32
    %c0_i32_0 = arith.constant 0 : i32
    %c0_i32_1 = arith.constant 0 : i32
    return %arg0, %c0_i32, %c0_i32_0 : i32, i32, i32
  }
  func.func @transform_1(%arg0: i32) -> (i32, i32) {
    %c0_i32 = arith.constant 0 : i32
    %c0_i32_0 = arith.constant 0 : i32
    %c0_i32_1 = arith.constant 0 : i32
    return %c0_i32, %c0_i32_0 : i32, i32
  }
  func.func @transform_2(%arg0: i32) -> (i32, i32) {
    %c0_i32 = arith.constant 0 : i32
    %c0_i32_0 = arith.constant 0 : i32
    %c0_i32_1 = arith.constant 0 : i32
    return %c0_i32, %c0_i32_0 : i32, i32
  }
  func.func @transform_3(%arg0: i32) -> (i32, i32, i32) {
    %c0_i32 = arith.constant 0 : i32
    %c0_i32_0 = arith.constant 0 : i32
    %c0_i32_1 = arith.constant 0 : i32
    return %arg0, %c0_i32, %c0_i32_0 : i32, i32, i32
  }
}

module attributes {stable_mosaic.version = 11 : i64} {
  func.func @kernel(%arg0: i32, %arg1: i32, %arg2: memref<1x2x72x128xbf16, #tpu.memory_space<vmem>>, %arg3: memref<3x128x128xbf16, #tpu.memory_space<vmem>>, %arg4: memref<1x128xf32, #tpu.memory_space<vmem>>, %arg5: memref<1x64x128xbf16, #tpu.memory_space<vmem>>, %arg6: memref<1x2x128xf32, #tpu.memory_space<vmem>>) attributes {dimension_semantics = [#tpu.dimension_semantics<parallel>, #tpu.dimension_semantics<parallel>], iteration_bounds = array<i64: 2, 1>, scalar_prefetch = 0 : i64, scratch_operands = 0 : i64, tpu.core_type = #tpu.core_type<tc>, window_params = [{transform_indices = @transform_0, window_bounds = array<i64: 1, 2, 72, 128>}, {pipeline_mode = #tpu.pipeline_mode<synchronous>, transform_indices = @transform_1, window_bounds = array<i64: 3, 128, 128>}, {pipeline_mode = #tpu.pipeline_mode<synchronous>, transform_indices = @transform_2, window_bounds = array<i64: 1, 128>}, {transform_indices = @transform_3, window_bounds = array<i64: 1, 64, 128>}, {transform_indices = @transform_4, window_bounds = array<i64: 1, 2, 128>}]} {
    %cst = arith.constant 0.000000e+00 : f32
    %0 = vector.broadcast %cst : f32 to vector<64x128xf32>
    %c8_i32 = arith.constant 8 : i32
    %1 = arith.muli %arg1, %c8_i32 : i32
    %c0_i32 = arith.constant 0 : i32
    %2 = arith.addi %1, %c0_i32 : i32
    %c8_i32_0 = arith.constant 8 : i32
    %3 = arith.muli %2, %c8_i32_0 : i32
    %c0 = arith.constant 0 : index
    %c0_1 = arith.constant 0 : index
    %4 = arith.index_cast %3 : i32 to index
    %c0_2 = arith.constant 0 : index
    %5 = vector.load %arg2[%c0, %c0_1, %4, %c0_2] : memref<1x2x72x128xbf16, #tpu.memory_space<vmem>>, vector<1x1x64x128xbf16>
    %6 = vector.shape_cast %5 : vector<1x1x64x128xbf16> to vector<64x128xbf16>
    %c0_3 = arith.constant 0 : index
    %c0_4 = arith.constant 0 : index
    %c0_5 = arith.constant 0 : index
    %7 = vector.load %arg3[%c0_3, %c0_4, %c0_5] : memref<3x128x128xbf16, #tpu.memory_space<vmem>>, vector<1x128x128xbf16>
    %8 = vector.shape_cast %7 : vector<1x128x128xbf16> to vector<128x128xbf16>
    %cst_6 = arith.constant dense<0.000000e+00> : vector<64x128xf32>
    %9 = tpu.matmul %6, %8, %cst_6 {dimension_numbers = #tpu.dot_dimension_numbers<[1], [0], [0], [1], [0, 0, 1, 1], [], []>} : vector<64x128xbf16>, vector<128x128xbf16>, vector<64x128xf32> -> vector<64x128xf32>
    %10 = arith.addf %0, %9 : vector<64x128xf32>
    %c8_i32_7 = arith.constant 8 : i32
    %11 = arith.muli %arg1, %c8_i32_7 : i32
    %c0_i32_8 = arith.constant 0 : i32
    %12 = arith.addi %11, %c0_i32_8 : i32
    %c8_i32_9 = arith.constant 8 : i32
    %13 = arith.muli %12, %c8_i32_9 : i32
    %c0_10 = arith.constant 0 : index
    %c1 = arith.constant 1 : index
    %14 = arith.index_cast %13 : i32 to index
    %c0_11 = arith.constant 0 : index
    %15 = vector.load %arg2[%c0_10, %c1, %14, %c0_11] : memref<1x2x72x128xbf16, #tpu.memory_space<vmem>>, vector<1x1x64x128xbf16>
    %16 = vector.shape_cast %15 : vector<1x1x64x128xbf16> to vector<64x128xbf16>
    %c1_12 = arith.constant 1 : index
    %c0_13 = arith.constant 0 : index
    %c0_14 = arith.constant 0 : index
    %17 = vector.load %arg3[%c1_12, %c0_13, %c0_14] : memref<3x128x128xbf16, #tpu.memory_space<vmem>>, vector<1x128x128xbf16>
    %18 = vector.shape_cast %17 : vector<1x128x128xbf16> to vector<128x128xbf16>
    %cst_15 = arith.constant dense<0.000000e+00> : vector<64x128xf32>
    %19 = tpu.matmul %16, %18, %cst_15 {dimension_numbers = #tpu.dot_dimension_numbers<[1], [0], [0], [1], [0, 0, 1, 1], [], []>} : vector<64x128xbf16>, vector<128x128xbf16>, vector<64x128xf32> -> vector<64x128xf32>
    %20 = arith.addf %10, %19 : vector<64x128xf32>
    %c8_i32_16 = arith.constant 8 : i32
    %21 = arith.muli %arg1, %c8_i32_16 : i32
    %c1_i32 = arith.constant 1 : i32
    %22 = arith.addi %21, %c1_i32 : i32
    %c8_i32_17 = arith.constant 8 : i32
    %23 = arith.muli %22, %c8_i32_17 : i32
    %c0_18 = arith.constant 0 : index
    %c0_19 = arith.constant 0 : index
    %24 = arith.index_cast %23 : i32 to index
    %c0_20 = arith.constant 0 : index
    %25 = vector.load %arg2[%c0_18, %c0_19, %24, %c0_20] : memref<1x2x72x128xbf16, #tpu.memory_space<vmem>>, vector<1x1x64x128xbf16>
    %26 = vector.shape_cast %25 : vector<1x1x64x128xbf16> to vector<64x128xbf16>
    %c2 = arith.constant 2 : index
    %c0_21 = arith.constant 0 : index
    %c0_22 = arith.constant 0 : index
    %27 = vector.load %arg3[%c2, %c0_21, %c0_22] : memref<3x128x128xbf16, #tpu.memory_space<vmem>>, vector<1x128x128xbf16>
    %28 = vector.shape_cast %27 : vector<1x128x128xbf16> to vector<128x128xbf16>
    %cst_23 = arith.constant dense<0.000000e+00> : vector<64x128xf32>
    %29 = tpu.matmul %26, %28, %cst_23 {dimension_numbers = #tpu.dot_dimension_numbers<[1], [0], [0], [1], [0, 0, 1, 1], [], []>} : vector<64x128xbf16>, vector<128x128xbf16>, vector<64x128xf32> -> vector<64x128xf32>
    %30 = arith.addf %20, %29 : vector<64x128xf32>
    %c0_24 = arith.constant 0 : index
    %c0_25 = arith.constant 0 : index
    %31 = vector.load %arg4[%c0_24, %c0_25] : memref<1x128xf32, #tpu.memory_space<vmem>>, vector<1x128xf32>
    %32 = vector.broadcast %31 : vector<1x128xf32> to vector<64x128xf32>
    %33 = arith.addf %30, %32 : vector<64x128xf32>
    %cst_26 = arith.constant 0.000000e+00 : f32
    %34 = vector.broadcast %cst_26 : f32 to vector<64x128xf32>
    %35 = arith.maximumf %33, %34 : vector<64x128xf32>
    %36 = arith.truncf %35 : vector<64x128xf32> to vector<64x128xbf16>
    %c0_27 = arith.constant 0 : index
    %c0_28 = arith.constant 0 : index
    %c0_29 = arith.constant 0 : index
    %37 = vector.load %arg5[%c0_27, %c0_28, %c0_29] : memref<1x64x128xbf16, #tpu.memory_space<vmem>>, vector<1x64x128xbf16>
    %38 = vector.shape_cast %37 : vector<1x64x128xbf16> to vector<64x128xbf16>
    %39 = vector.shape_cast %36 : vector<64x128xbf16> to vector<1x64x128xbf16>
    tpu.vector_store %arg5[%c0_27, %c0_28, %c0_29], %39 {strides = array<i32>} : memref<1x64x128xbf16, #tpu.memory_space<vmem>>, vector<1x64x128xbf16>,
    %c0_i32_30 = arith.constant 0 : i32
    %40 = arith.cmpi eq, %arg1, %c0_i32_30 : i32
    %true = arith.constant true
    %41 = arith.xori %40, %true : i1
    %42 = arith.extui %41 : i1 to i32
    %c0_i32_31 = arith.constant 0 : i32
    %43 = arith.cmpi ne, %42, %c0_i32_31 : i32
    scf.if %43 {
      %cst_33 = arith.constant dense<0.000000e+00> : vector<128xf32>
      %46 = vector.multi_reduction <add>, %35, %cst_33 [0] : vector<64x128xf32> to vector<128xf32>
      %47 = vector.shape_cast %46 : vector<128xf32> to vector<1x128xf32>
      %c0_34 = arith.constant 0 : index
      %c0_35 = arith.constant 0 : index
      %c0_36 = arith.constant 0 : index
      %48 = vector.load %arg6[%c0_34, %c0_35, %c0_36] : memref<1x2x128xf32, #tpu.memory_space<vmem>>, vector<1x1x128xf32>
      %49 = vector.shape_cast %48 : vector<1x1x128xf32> to vector<1x128xf32>
      %50 = vector.shape_cast %47 : vector<1x128xf32> to vector<1x1x128xf32>
      tpu.vector_store %arg6[%c0_34, %c0_35, %c0_36], %50 {strides = array<i32>} : memref<1x2x128xf32, #tpu.memory_space<vmem>>, vector<1x1x128xf32>,
      %51 = arith.mulf %35, %35 : vector<64x128xf32>
      %cst_37 = arith.constant dense<0.000000e+00> : vector<128xf32>
      %52 = vector.multi_reduction <add>, %51, %cst_37 [0] : vector<64x128xf32> to vector<128xf32>
      %53 = vector.shape_cast %52 : vector<128xf32> to vector<1x128xf32>
      %c0_38 = arith.constant 0 : index
      %c1_39 = arith.constant 1 : index
      %c0_40 = arith.constant 0 : index
      %54 = vector.load %arg6[%c0_38, %c1_39, %c0_40] : memref<1x2x128xf32, #tpu.memory_space<vmem>>, vector<1x1x128xf32>
      %55 = vector.shape_cast %54 : vector<1x1x128xf32> to vector<1x128xf32>
      %56 = vector.shape_cast %53 : vector<1x128xf32> to vector<1x1x128xf32>
      tpu.vector_store %arg6[%c0_38, %c1_39, %c0_40], %56 {strides = array<i32>} : memref<1x2x128xf32, #tpu.memory_space<vmem>>, vector<1x1x128xf32>,
    } else {
    }
    %44 = arith.extui %40 : i1 to i32
    %c0_i32_32 = arith.constant 0 : i32
    %45 = arith.cmpi ne, %44, %c0_i32_32 : i32
    scf.if %45 {
      %c8_i32_33 = arith.constant 8 : i32
      %46 = arith.muli %arg1, %c8_i32_33 : i32
      %c8_i32_34 = arith.constant 8 : i32
      %47 = arith.subi %c8_i32_34, %46 : i32
      %c8_i32_35 = arith.constant 8 : i32
      %48 = arith.muli %47, %c8_i32_35 : i32
      %49 = tpu.iota {dimensions = array<i32: 0>} : vector<64x1xi32>
      %50 = vector.broadcast %48 : i32 to vector<64x1xi32>
      %51 = arith.cmpi slt, %49, %50 : vector<64x1xi32>
      %cst_36 = arith.constant 0.000000e+00 : f32
      %52 = vector.shape_cast %51 : vector<64x1xi1> to vector<64x1xi1>
      %53 = vector.broadcast %52 : vector<64x1xi1> to vector<64x128xi1>
      %54 = vector.broadcast %cst_36 : f32 to vector<64x128xf32>
      %55 = arith.select %53, %35, %54 : vector<64x128xi1>, vector<64x128xf32>
      %cst_37 = arith.constant dense<0.000000e+00> : vector<128xf32>
      %56 = vector.multi_reduction <add>, %55, %cst_37 [0] : vector<64x128xf32> to vector<128xf32>
      %57 = vector.shape_cast %56 : vector<128xf32> to vector<1x128xf32>
      %c0_38 = arith.constant 0 : index
      %c0_39 = arith.constant 0 : index
      %c0_40 = arith.constant 0 : index
      %58 = vector.load %arg6[%c0_38, %c0_39, %c0_40] : memref<1x2x128xf32, #tpu.memory_space<vmem>>, vector<1x1x128xf32>
      %59 = vector.shape_cast %58 : vector<1x1x128xf32> to vector<1x128xf32>
      %60 = vector.shape_cast %57 : vector<1x128xf32> to vector<1x1x128xf32>
      tpu.vector_store %arg6[%c0_38, %c0_39, %c0_40], %60 {strides = array<i32>} : memref<1x2x128xf32, #tpu.memory_space<vmem>>, vector<1x1x128xf32>,
      %61 = arith.mulf %55, %55 : vector<64x128xf32>
      %cst_41 = arith.constant dense<0.000000e+00> : vector<128xf32>
      %62 = vector.multi_reduction <add>, %61, %cst_41 [0] : vector<64x128xf32> to vector<128xf32>
      %63 = vector.shape_cast %62 : vector<128xf32> to vector<1x128xf32>
      %c0_42 = arith.constant 0 : index
      %c1_43 = arith.constant 1 : index
      %c0_44 = arith.constant 0 : index
      %64 = vector.load %arg6[%c0_42, %c1_43, %c0_44] : memref<1x2x128xf32, #tpu.memory_space<vmem>>, vector<1x1x128xf32>
      %65 = vector.shape_cast %64 : vector<1x1x128xf32> to vector<1x128xf32>
      %66 = vector.shape_cast %63 : vector<1x128xf32> to vector<1x1x128xf32>
      tpu.vector_store %arg6[%c0_42, %c1_43, %c0_44], %66 {strides = array<i32>} : memref<1x2x128xf32, #tpu.memory_space<vmem>>, vector<1x1x128xf32>,
    } else {
    }
    return
  }
  func.func @transform_0(%arg0: i32, %arg1: i32) -> (i32, i32, i32, i32) {
    %c0_i32 = arith.constant 0 : i32
    %c0_i32_0 = arith.constant 0 : i32
    %c0_i32_1 = arith.constant 0 : i32
    %c0_i32_2 = arith.constant 0 : i32
    return %arg0, %c0_i32, %c0_i32_0, %c0_i32_1 : i32, i32, i32, i32
  }
  func.func @transform_1(%arg0: i32, %arg1: i32) -> (i32, i32, i32) {
    %c0_i32 = arith.constant 0 : i32
    %c0_i32_0 = arith.constant 0 : i32
    %c0_i32_1 = arith.constant 0 : i32
    %c0_i32_2 = arith.constant 0 : i32
    return %c0_i32, %c0_i32_0, %c0_i32_1 : i32, i32, i32
  }
  func.func @transform_2(%arg0: i32, %arg1: i32) -> (i32, i32) {
    %c0_i32 = arith.constant 0 : i32
    %c0_i32_0 = arith.constant 0 : i32
    %c0_i32_1 = arith.constant 0 : i32
    return %c0_i32, %c0_i32_0 : i32, i32
  }
  func.func @transform_3(%arg0: i32, %arg1: i32) -> (i32, i32, i32) {
    %c1_i32 = arith.constant 1 : i32
    %0 = arith.muli %arg0, %c1_i32 : i32
    %1 = arith.addi %0, %arg1 : i32
    %c0_i32 = arith.constant 0 : i32
    %c0_i32_0 = arith.constant 0 : i32
    %c0_i32_1 = arith.constant 0 : i32
    return %1, %c0_i32, %c0_i32_0 : i32, i32, i32
  }
  func.func @transform_4(%arg0: i32, %arg1: i32) -> (i32, i32, i32) {
    %c1_i32 = arith.constant 1 : i32
    %0 = arith.muli %arg0, %c1_i32 : i32
    %1 = arith.addi %0, %arg1 : i32
    %c0_i32 = arith.constant 0 : i32
    %c0_i32_0 = arith.constant 0 : i32
    %c0_i32_1 = arith.constant 0 : i32
    return %1, %c0_i32, %c0_i32_0 : i32, i32, i32
  }
}

</mosaic_0001>

<llo_original>
// kernel: downsample_block.3
$region0: #{downsample_block.3}
  #allocation0 [shape = 'u32[]', space=smem, size = 0x4, offset = 0x4, fixed_abs, tag = 'smem constant byte address 0x4 - core index']
  #allocation1 [shape = 'u32[144,128]{1,0:T(1,128)}', space=vmem, size = 0x12000, scoped, tag = 'internal scratch']
  %s0 = inlined_call_operand.vmem [shape: bf16[2,64,128], index: 0, kind: input, shape index: {}]
  %s1 = inlined_call_operand.vmem [shape: f32[1,128], index: 1, kind: input, shape index: {}]
  %s2 = inlined_call_operand.vmem [shape: f32[1,128], index: 2, kind: input, shape index: {}]
  %s3 = inlined_call_operand.vmem [shape: f32[2,64,128], index: 3, kind: output, shape index: {}]
  %s4 = sld [smem:[#allocation0]]
  $region45: #{downsample_block.3} parent=0
    _
  %s6 = ssub.s32 1, %s4
  %s7 = scalar_select 0, %s6, %s4
  loop: start=0, step=1, limit=4
  $region2: #{downsample_block.3} parent=0 // loop_pre_header
    _
  $region3: #{downsample_block.3} parent=0 // loop_header
    %s9 = sphi 0, %s13
    %p10 = scmp.ge.s32.totalorder %s9, 4
    %s19 = sphi 0, %s21
    %s22 = sphi 0, %s19
    %s23 = sphi 0, %s22
    %s39 = sphi 0, %s23
    %s43 = sphi 0, %s43
    %s45 = sphi 0, %s43
    %s46 = sphi 0, %s45
    %s60 = sphi 0, %s46
    %s64 = sphi 0, %s64
    %s66 = sphi 0, %s64
    %s67 = sphi 0, %s66
    %s81 = sphi 0, %s67
    %s87 = sphi 0, %s89
    %s90 = sphi 0, %s87
    %s91 = sphi 0, %s90
    %s107 = sphi 0, %s91
  $region4: #{downsample_block.3} parent=0 // loop_header_branch
    %12 = sbr.rel (%p10) target = $region8
  $region5: #{downsample_block.3} parent=0 // loop_body
    %s14 = ssub.s32 %s9, 1
    %s15 = ssub.s32 %s9, 2
    %s16 = sadd.s32 %s9, 1
    %s17 = ssub.s32 %s9, %s16
    %p18 = scmp.eq.s32.totalorder %s17, 0
    %s20 = sadd.s32 %s19, 1
    %s21 = scalar_select %p18, %s19, %s20
    %p24 = pneg %p18
    %p25 = scmp.eq.s32.totalorder %s9, 1
    %p26 = por %p24, %p25
    %p27 = scmp.ne.s32.totalorder %s19, %s22
    %p28 = scmp.eq.s32.totalorder %s9, 0
    %p29 = por %p27, %p28
    %p30 = scmp.ne.s32.totalorder %s19, %s22
    %p31 = scmp.eq.s32.totalorder %s14, 1
    %p32 = por %p30, %p31
    %p33 = scmp.ne.s32.totalorder %s22, %s23
    %p34 = scmp.eq.s32.totalorder %s14, 0
    %p35 = por %p33, %p34
    %p36 = scmp.ne.s32.totalorder %s22, %s23
    %p37 = scmp.eq.s32.totalorder %s15, 1
    %p38 = por %p36, %p37
    %p40 = scmp.ne.s32.totalorder %s23, %s39
    %p41 = scmp.eq.s32.totalorder %s15, 0
    %p42 = por %p40, %p41
    %s44 = sadd.s32 %s43, 1
    %p47 = scmp.eq.s32.totalorder %s9, 1
    %p48 = scmp.ne.s32.totalorder %s43, %s45
    %p49 = scmp.eq.s32.totalorder %s9, 0
    %p50 = por %p48, %p49
    %p51 = scmp.ne.s32.totalorder %s43, %s45
    %p52 = scmp.eq.s32.totalorder %s14, 1
    %p53 = por %p51, %p52
    %p54 = scmp.ne.s32.totalorder %s45, %s46
    %p55 = scmp.eq.s32.totalorder %s14, 0
    %p56 = por %p54, %p55
    %p57 = scmp.ne.s32.totalorder %s45, %s46
    %p58 = scmp.eq.s32.totalorder %s15, 1
    %p59 = por %p57, %p58
    %p61 = scmp.ne.s32.totalorder %s46, %s60
    %p62 = scmp.eq.s32.totalorder %s15, 0
    %p63 = por %p61, %p62
    %s65 = sadd.s32 %s64, 1
    %p68 = scmp.eq.s32.totalorder %s9, 1
    %p69 = scmp.ne.s32.totalorder %s64, %s66
    %p70 = scmp.eq.s32.totalorder %s9, 0
    %p71 = por %p69, %p70
    %p72 = scmp.ne.s32.totalorder %s64, %s66
    %p73 = scmp.eq.s32.totalorder %s14, 1
    %p74 = por %p72, %p73
    %p75 = scmp.ne.s32.totalorder %s66, %s67
    %p76 = scmp.eq.s32.totalorder %s14, 0
    %p77 = por %p75, %p76
    %p78 = scmp.ne.s32.totalorder %s66, %s67
    %p79 = scmp.eq.s32.totalorder %s15, 1
    %p80 = por %p78, %p79
    %p82 = scmp.ne.s32.totalorder %s67, %s81
    %p83 = scmp.eq.s32.totalorder %s15, 0
    %p84 = por %p82, %p83
    %s85 = ssub.s32 %s9, %s16
    %p86 = scmp.eq.s32.totalorder %s85, 0
    %s88 = sadd.s32 %s87, 1
    %s89 = scalar_select %p86, %s87, %s88
    %p92 = pneg %p86
    %p93 = scmp.eq.s32.totalorder %s9, 1
    %p94 = por %p92, %p93
    %p95 = scmp.ne.s32.totalorder %s87, %s90
    %p96 = scmp.eq.s32.totalorder %s9, 0
    %p97 = por %p95, %p96
    %p98 = scmp.ne.s32.totalorder %s87, %s90
    %p99 = scmp.eq.s32.totalorder %s14, 1
    %p100 = por %p98, %p99
    %p101 = scmp.ne.s32.totalorder %s90, %s91
    %p102 = scmp.eq.s32.totalorder %s14, 0
    %p103 = por %p101, %p102
    %p104 = scmp.ne.s32.totalorder %s90, %s91
    %p105 = scmp.eq.s32.totalorder %s15, 1
    %p106 = por %p104, %p105
    %p108 = scmp.ne.s32.totalorder %s91, %s107
    %p109 = scmp.eq.s32.totalorder %s15, 0
    %p110 = por %p108, %p109
    %p111 = scmp.le.s32.totalorder 1, %s9
    %p112 = scmp.lt.s32.totalorder %s9, 3
    %p113 = pnand %p111, %p112
    %p114 = pneg %p113
    // Predicated region
    $region9: #{downsample_block.3} parent=5 // pred_check
      _
    $region10: #{downsample_block.3} parent=5 // pred_check_branch
      %116 = sbr.rel (%p113) target = $region12
    $region11: #{downsample_block.3} parent=5 // pred_region
      %s117 = ssub.s32 %s9, 1
      // Predicated region
      $region13: #{downsample_block.3} parent=11 // pred_check
        %p118 = pneg %p56
      $region14: #{downsample_block.3} parent=11 // pred_check_branch
        %120 = sbr.rel (%p118) target = $region16
      $region15: #{downsample_block.3} parent=11 // pred_region
        _
      $region16: #{downsample_block.3} parent=11 // pred_fallthru
        _
      // Predicated region
      $region17: #{downsample_block.3} parent=11 // pred_check
        %p121 = pneg %p77
      $region18: #{downsample_block.3} parent=11 // pred_check_branch
        %123 = sbr.rel (%p121) target = $region20
      $region19: #{downsample_block.3} parent=11 // pred_region
        _
      $region20: #{downsample_block.3} parent=11 // pred_fallthru
        _
    $region12: #{downsample_block.3} parent=5 // pred_fallthru
      _
    %p124 = scmp.lt.s32.totalorder %s9, 2
    // Predicated region
    $region21: #{downsample_block.3} parent=5 // pred_check
      %p125 = pneg %p124
    $region22: #{downsample_block.3} parent=5 // pred_check_branch
      %127 = sbr.rel (%p125) target = $region24
    $region23: #{downsample_block.3} parent=5 // pred_region
      // Predicated region
      $region25: #{downsample_block.3} parent=23 // pred_check
        %p128 = pneg %p29
      $region26: #{downsample_block.3} parent=23 // pred_check_branch
        %130 = sbr.rel (%p128) target = $region28
      $region27: #{downsample_block.3} parent=23 // pred_region
        %p131 = scmp.lt.s32.totalorder %s9, 1
        %s132 = scalar_select %p131, %s9, 1
        %s133 = smul.addr %s132, 8
        %s134 = smul.addr %s133, 4
        %s135 = scalar_lea.vmem %s0, %s134
      $region28: #{downsample_block.3} parent=23 // pred_fallthru
        _
    $region24: #{downsample_block.3} parent=5 // pred_fallthru
      _
    %p136 = scmp.le.s32.totalorder 1, %s9
    %p137 = scmp.lt.s32.totalorder %s9, 3
    %p138 = pnand %p136, %p137
    %p139 = pneg %p138
    // Predicated region
    $region29: #{downsample_block.3} parent=5 // pred_check
      _
    $region30: #{downsample_block.3} parent=5 // pred_check_branch
      %141 = sbr.rel (%p138) target = $region32
    $region31: #{downsample_block.3} parent=5 // pred_region
      %s142 = ssub.s32 %s9, 1
      %p143 = scmp.lt.s32.totalorder %s14, 1
      %s144 = scalar_select %p143, %s14, 1
      %s145 = smul.addr %s144, 8
      %s146 = smul.addr %s145, 4
      %s147 = scalar_lea.vmem %s0, %s146
      %p148 = pneg %p35
      %p149 = pneg %p32
      %p150 = pneg %p56
      %p151 = pneg %p53
      %p152 = pneg %p77
      %p153 = pneg %p74
      %p154 = pneg %p103
      %p155 = pneg %p100
      %p156 = scmp.lt.s32.totalorder %s14, 1
      %s157 = scalar_select %p156, %s14, 1
      %s158 = smul.addr %s157, 8
      %s159 = smul.addr %s158, 8
      %s160 = scalar_lea.vmem %s3, %s159
      %p161 = scmp.lt.s32.totalorder %s14, 1
      %s162 = scalar_select %p161, %s14, 1
      %s163 = smul.addr %s162, 8
      %s164 = smul.addr %s163, 4
      %s165 = scalar_lea.vmem %s0, %s164
      %p166 = scmp.lt.s32.totalorder %s14, 1
      %s167 = scalar_select %p166, %s14, 1
      %s168 = smul.addr %s167, 8
      %s169 = smul.addr %s168, 8
      %s170 = scalar_lea.vmem %s3, %s169
      %v171 = vld [vmem:[%s165] sm:$0xf]
      %v172 = vld [vmem:[%s165 + $0x4] sm:$0xf]
      %v173 = vld [vmem:[%s165 + $0x8] sm:$0xf]
      %v174 = vld [vmem:[%s165 + $0xc] sm:$0xf]
      %v175 = vld [vmem:[%s165 + $0x10] sm:$0xf]
      %v176 = vld [vmem:[%s165 + $0x14] sm:$0xf]
      %v177 = vld [vmem:[%s165 + $0x18] sm:$0xf]
      %v178 = vld [vmem:[%s165 + $0x1c] sm:$0xf]
      %v179 = vunpack.c.l.bf16 %v171
      %v180 = vunpack.c.l.bf16 %v172
      %v181 = vunpack.c.l.bf16 %v173
      %v182 = vunpack.c.l.bf16 %v174
      %v183 = vunpack.c.l.bf16 %v175
      %v184 = vunpack.c.l.bf16 %v176
      %v185 = vunpack.c.l.bf16 %v177
      %v186 = vunpack.c.l.bf16 %v178
      %v187 = vld [vmem:[%s1] sm:$0x1]
      %v189 = vlaneseq
      %v190 = vshrl.u32 %v189, 7
      %v191 = vsub.s32 0, %v190
      %v192 = vrot.slane %v187, %v191
      %v194 = vmul.f32 %v179, %v192
      %v195 = vmul.f32 %v180, %v192
      %v196 = vmul.f32 %v181, %v192
      %v197 = vmul.f32 %v182, %v192
      %v198 = vmul.f32 %v183, %v192
      %v199 = vmul.f32 %v184, %v192
      %v200 = vmul.f32 %v185, %v192
      %v201 = vmul.f32 %v186, %v192
      %v202 = vld [vmem:[%s2] sm:$0x1]
      %v204 = vlaneseq
      %v205 = vshrl.u32 %v204, 7
      %v206 = vsub.s32 0, %v205
      %v207 = vrot.slane %v202, %v206
      %v209 = vadd.f32 %v194, %v207
      %v210 = vadd.f32 %v195, %v207
      %v211 = vadd.f32 %v196, %v207
      %v212 = vadd.f32 %v197, %v207
      %v213 = vadd.f32 %v198, %v207
      %v214 = vadd.f32 %v199, %v207
      %v215 = vadd.f32 %v200, %v207
      %v216 = vadd.f32 %v201, %v207
      %217 = vst [vmem:[%s170] sm:$0xff] %v209
      %218 = vst [vmem:[%s170 + $0x8] sm:$0xff] %v210
      %219 = vst [vmem:[%s170 + $0x10] sm:$0xff] %v211
      %220 = vst [vmem:[%s170 + $0x18] sm:$0xff] %v212
      %221 = vst [vmem:[%s170 + $0x20] sm:$0xff] %v213
      %222 = vst [vmem:[%s170 + $0x28] sm:$0xff] %v214
      %223 = vst [vmem:[%s170 + $0x30] sm:$0xff] %v215
      %224 = vst [vmem:[%s170 + $0x38] sm:$0xff] %v216
      %p225 = scmp.lt.s32.totalorder %s14, 1
      %s226 = scalar_select %p225, %s14, 1
      %s227 = smul.addr %s226, 8
      %s228 = smul.addr %s227, 8
      %s229 = scalar_lea.vmem %s3, %s228
      // Predicated region
      $region33: #{downsample_block.3} parent=31 // pred_check
        %p230 = pneg %p100
      $region34: #{downsample_block.3} parent=31 // pred_check_branch
        %232 = sbr.rel (%p230) target = $region36
      $region35: #{downsample_block.3} parent=31 // pred_region
        _
      $region36: #{downsample_block.3} parent=31 // pred_fallthru
        _
    $region32: #{downsample_block.3} parent=5 // pred_fallthru
      _
    %p233 = scmp.le.s32.totalorder 2, %s9
    // Predicated region
    $region37: #{downsample_block.3} parent=5 // pred_check
      %p234 = pneg %p233
    $region38: #{downsample_block.3} parent=5 // pred_check_branch
      %236 = sbr.rel (%p234) target = $region40
    $region39: #{downsample_block.3} parent=5 // pred_region
      %s237 = ssub.s32 %s9, 2
      // Predicated region
      $region41: #{downsample_block.3} parent=39 // pred_check
        %p238 = pneg %p106
      $region42: #{downsample_block.3} parent=39 // pred_check_branch
        %240 = sbr.rel (%p238) target = $region44
      $region43: #{downsample_block.3} parent=39 // pred_region
        %p241 = scmp.lt.s32.totalorder %s15, 1
        %s242 = scalar_select %p241, %s15, 1
        %s243 = smul.addr %s242, 8
        %s244 = smul.addr %s243, 8
        %s245 = scalar_lea.vmem %s3, %s244
      $region44: #{downsample_block.3} parent=39 // pred_fallthru
        _
    $region40: #{downsample_block.3} parent=5 // pred_fallthru
      _
  $region6: #{downsample_block.3} parent=0 // loop_footer
    %s13 = sadd.s32 1, %s9
  $region7: #{downsample_block.3} parent=0 // loop_footer_branch
    %8 = sbr.rel target = $region3
  $region8: #{downsample_block.3} parent=0 // loop_exit
    _

// kernel: downsample_block.2
$region0: #{downsample_block.2}
  #allocation0 [shape = 'u32[]', space=smem, size = 0x4, offset = 0x4, fixed_abs, tag = 'smem constant byte address 0x4 - core index']
  #allocation1 [shape = 'u32[144,128]{1,0:T(1,128)}', space=vmem, size = 0x12000, scoped, tag = 'internal scratch']
  %s0 = inlined_call_operand.vmem [shape: bf16[2,2,72,128], index: 0, kind: input, shape index: {}]
  %s1 = inlined_call_operand.vmem [shape: bf16[3,128,128], index: 1, kind: input, shape index: {}]
  %s2 = inlined_call_operand.vmem [shape: f32[1,128], index: 2, kind: input, shape index: {}]
  %s3 = inlined_call_operand.vmem [shape: bf16[2,64,128], index: 3, kind: output, shape index: {0}]
  %s4 = inlined_call_operand.vmem [shape: f32[2,2,128], index: 4, kind: output, shape index: {1}]
  %5 = xla_tuple %s3, %s4
  %s6 = sld [smem:[#allocation0]]
  $region61: #{downsample_block.2} parent=0
    _
  %s8 = ssub.s32 1, %s6
  %s9 = scalar_select 0, %s8, %s6
  loop: start=0, step=1, limit=4
  $region2: #{downsample_block.2} parent=0 // loop_pre_header
    _
  $region3: #{downsample_block.2} parent=0 // loop_header
    %s11 = sphi 0, %s15
    %p12 = scmp.ge.s32.totalorder %s11, 4
    %s18 = sphi 0, %s30
    %s19 = sphi 0, %s26
    %s20 = sphi 0, %s18
    %s21 = sphi 0, %s19
    %s22 = sphi 0, %s20
    %s23 = sphi 0, %s21
    %s33 = sphi 0, %s35
    %s36 = sphi 0, %s33
    %s37 = sphi 0, %s36
    %s53 = sphi 0, %s37
    %s57 = sphi 0, %s57
    %s59 = sphi 0, %s57
    %s60 = sphi 0, %s59
    %s74 = sphi 0, %s60
    %s78 = sphi 0, %s78
    %s80 = sphi 0, %s78
    %s81 = sphi 0, %s80
    %s95 = sphi 0, %s81
    %s103 = sphi 0, %s105
    %s106 = sphi 0, %s103
    %s107 = sphi 0, %s106
    %s123 = sphi 0, %s107
    %s131 = sphi 0, %s133
    %s134 = sphi 0, %s131
    %s135 = sphi 0, %s134
    %s151 = sphi 0, %s135
  $region4: #{downsample_block.2} parent=0 // loop_header_branch
    %14 = sbr.rel (%p12) target = $region8
  $region5: #{downsample_block.2} parent=0 // loop_body
    %s16 = ssub.s32 %s11, 1
    %s17 = ssub.s32 %s11, 2
    %s24 = sadd.s32 1, %s19
    %p25 = scmp.ge.s32.totalorder %s24, 1
    %s26 = scalar_select %p25, 0, %s24
    %s27 = sadd.s32 1, %s18
    %s28 = scalar_select %p25, %s27, %s18
    %p29 = scmp.ge.s32.totalorder %s28, 2
    %s30 = scalar_select %p29, 0, %s28
    %s31 = ssub.s32 %s18, %s30
    %p32 = scmp.eq.s32.totalorder %s31, 0
    %s34 = sadd.s32 %s33, 1
    %s35 = scalar_select %p32, %s33, %s34
    %p38 = pneg %p32
    %p39 = scmp.eq.s32.totalorder %s11, 1
    %p40 = por %p38, %p39
    %p41 = scmp.ne.s32.totalorder %s33, %s36
    %p42 = scmp.eq.s32.totalorder %s11, 0
    %p43 = por %p41, %p42
    %p44 = scmp.ne.s32.totalorder %s33, %s36
    %p45 = scmp.eq.s32.totalorder %s16, 1
    %p46 = por %p44, %p45
    %p47 = scmp.ne.s32.totalorder %s36, %s37
    %p48 = scmp.eq.s32.totalorder %s16, 0
    %p49 = por %p47, %p48
    %p50 = scmp.ne.s32.totalorder %s36, %s37
    %p51 = scmp.eq.s32.totalorder %s17, 1
    %p52 = por %p50, %p51
    %p54 = scmp.ne.s32.totalorder %s37, %s53
    %p55 = scmp.eq.s32.totalorder %s17, 0
    %p56 = por %p54, %p55
    %s58 = sadd.s32 %s57, 1
    %p61 = scmp.eq.s32.totalorder %s11, 1
    %p62 = scmp.ne.s32.totalorder %s57, %s59
    %p63 = scmp.eq.s32.totalorder %s11, 0
    %p64 = por %p62, %p63
    %p65 = scmp.ne.s32.totalorder %s57, %s59
    %p66 = scmp.eq.s32.totalorder %s16, 1
    %p67 = por %p65, %p66
    %p68 = scmp.ne.s32.totalorder %s59, %s60
    %p69 = scmp.eq.s32.totalorder %s16, 0
    %p70 = por %p68, %p69
    %p71 = scmp.ne.s32.totalorder %s59, %s60
    %p72 = scmp.eq.s32.totalorder %s17, 1
    %p73 = por %p71, %p72
    %p75 = scmp.ne.s32.totalorder %s60, %s74
    %p76 = scmp.eq.s32.totalorder %s17, 0
    %p77 = por %p75, %p76
    %s79 = sadd.s32 %s78, 1
    %p82 = scmp.eq.s32.totalorder %s11, 1
    %p83 = scmp.ne.s32.totalorder %s78, %s80
    %p84 = scmp.eq.s32.totalorder %s11, 0
    %p85 = por %p83, %p84
    %p86 = scmp.ne.s32.totalorder %s78, %s80
    %p87 = scmp.eq.s32.totalorder %s16, 1
    %p88 = por %p86, %p87
    %p89 = scmp.ne.s32.totalorder %s80, %s81
    %p90 = scmp.eq.s32.totalorder %s16, 0
    %p91 = por %p89, %p90
    %p92 = scmp.ne.s32.totalorder %s80, %s81
    %p93 = scmp.eq.s32.totalorder %s17, 1
    %p94 = por %p92, %p93
    %p96 = scmp.ne.s32.totalorder %s81, %s95
    %p97 = scmp.eq.s32.totalorder %s17, 0
    %p98 = por %p96, %p97
    %s99 = sadd.s32 %s18, %s19
    %s100 = sadd.s32 %s30, %s26
    %s101 = ssub.s32 %s99, %s100
    %p102 = scmp.eq.s32.totalorder %s101, 0
    %s104 = sadd.s32 %s103, 1
    %s105 = scalar_select %p102, %s103, %s104
    %p108 = pneg %p102
    %p109 = scmp.eq.s32.totalorder %s11, 1
    %p110 = por %p108, %p109
    %p111 = scmp.ne.s32.totalorder %s103, %s106
    %p112 = scmp.eq.s32.totalorder %s11, 0
    %p113 = por %p111, %p112
    %p114 = scmp.ne.s32.totalorder %s103, %s106
    %p115 = scmp.eq.s32.totalorder %s16, 1
    %p116 = por %p114, %p115
    %p117 = scmp.ne.s32.totalorder %s106, %s107
    %p118 = scmp.eq.s32.totalorder %s16, 0
    %p119 = por %p117, %p118
    %p120 = scmp.ne.s32.totalorder %s106, %s107
    %p121 = scmp.eq.s32.totalorder %s17, 1
    %p122 = por %p120, %p121
    %p124 = scmp.ne.s32.totalorder %s107, %s123
    %p125 = scmp.eq.s32.totalorder %s17, 0
    %p126 = por %p124, %p125
    %s127 = sadd.s32 %s18, %s19
    %s128 = sadd.s32 %s30, %s26
    %s129 = ssub.s32 %s127, %s128
    %p130 = scmp.eq.s32.totalorder %s129, 0
    %s132 = sadd.s32 %s131, 1
    %s133 = scalar_select %p130, %s131, %s132
    %p136 = pneg %p130
    %p137 = scmp.eq.s32.totalorder %s11, 1
    %p138 = por %p136, %p137
    %p139 = scmp.ne.s32.totalorder %s131, %s134
    %p140 = scmp.eq.s32.totalorder %s11, 0
    %p141 = por %p139, %p140
    %p142 = scmp.ne.s32.totalorder %s131, %s134
    %p143 = scmp.eq.s32.totalorder %s16, 1
    %p144 = por %p142, %p143
    %p145 = scmp.ne.s32.totalorder %s134, %s135
    %p146 = scmp.eq.s32.totalorder %s16, 0
    %p147 = por %p145, %p146
    %p148 = scmp.ne.s32.totalorder %s134, %s135
    %p149 = scmp.eq.s32.totalorder %s17, 1
    %p150 = por %p148, %p149
    %p152 = scmp.ne.s32.totalorder %s135, %s151
    %p153 = scmp.eq.s32.totalorder %s17, 0
    %p154 = por %p152, %p153
    %p155 = scmp.le.s32.totalorder 1, %s11
    %p156 = scmp.lt.s32.totalorder %s11, 3
    %p157 = pnand %p155, %p156
    %p158 = pneg %p157
    // Predicated region
    $region9: #{downsample_block.2} parent=5 // pred_check
      _
    $region10: #{downsample_block.2} parent=5 // pred_check_branch
      %160 = sbr.rel (%p157) target = $region12
    $region11: #{downsample_block.2} parent=5 // pred_region
      %s161 = ssub.s32 %s11, 1
      // Predicated region
      $region13: #{downsample_block.2} parent=11 // pred_check
        %p162 = pneg %p70
      $region14: #{downsample_block.2} parent=11 // pred_check_branch
        %164 = sbr.rel (%p162) target = $region16
      $region15: #{downsample_block.2} parent=11 // pred_region
        _
      $region16: #{downsample_block.2} parent=11 // pred_fallthru
        _
      // Predicated region
      $region17: #{downsample_block.2} parent=11 // pred_check
        %p165 = pneg %p91
      $region18: #{downsample_block.2} parent=11 // pred_check_branch
        %167 = sbr.rel (%p165) target = $region20
      $region19: #{downsample_block.2} parent=11 // pred_region
        _
      $region20: #{downsample_block.2} parent=11 // pred_fallthru
        _
    $region12: #{downsample_block.2} parent=5 // pred_fallthru
      _
    %p168 = scmp.lt.s32.totalorder %s11, 2
    // Predicated region
    $region21: #{downsample_block.2} parent=5 // pred_check
      %p169 = pneg %p168
    $region22: #{downsample_block.2} parent=5 // pred_check_branch
      %171 = sbr.rel (%p169) target = $region24
    $region23: #{downsample_block.2} parent=5 // pred_region
      // Predicated region
      $region25: #{downsample_block.2} parent=23 // pred_check
        %p172 = pneg %p43
      $region26: #{downsample_block.2} parent=23 // pred_check_branch
        %174 = sbr.rel (%p172) target = $region28
      $region27: #{downsample_block.2} parent=23 // pred_region
        %p175 = scmp.lt.s32.totalorder %s18, 1
        %s176 = scalar_select %p175, %s18, 1
        %s177 = smul.addr %s176, 18
        %s178 = smul.addr %s177, 4
        %s179 = scalar_lea.vmem %s0, %s178
      $region28: #{downsample_block.2} parent=23 // pred_fallthru
        _
    $region24: #{downsample_block.2} parent=5 // pred_fallthru
      _
    %p180 = scmp.le.s32.totalorder 1, %s11
    %p181 = scmp.lt.s32.totalorder %s11, 3
    %p182 = pnand %p180, %p181
    %p183 = pneg %p182
    // Predicated region
    $region29: #{downsample_block.2} parent=5 // pred_check
      _
    $region30: #{downsample_block.2} parent=5 // pred_check_branch
      %185 = sbr.rel (%p182) target = $region32
    $region31: #{downsample_block.2} parent=5 // pred_region
      %s186 = ssub.s32 %s11, 1
      %p187 = scmp.lt.s32.totalorder %s20, 1
      %s188 = scalar_select %p187, %s20, 1
      %s189 = smul.addr %s188, 18
      %s190 = smul.addr %s189, 4
      %s191 = scalar_lea.vmem %s0, %s190
      %p192 = pneg %p49
      %p193 = pneg %p46
      %p194 = pneg %p70
      %p195 = pneg %p67
      %p196 = pneg %p91
      %p197 = pneg %p88
      %p198 = pneg %p119
      %p199 = pneg %p116
      %s200 = sadd.s32 %s20, %s21
      %p201 = scmp.lt.s32.totalorder %s200, 1
      %s202 = scalar_select %p201, %s200, 1
      %s203 = smul.addr %s202, 8
      %s204 = smul.addr %s203, 4
      %s205 = scalar_lea.vmem %s3, %s204
      %p206 = pneg %p147
      %p207 = pneg %p144
      %s208 = sadd.s32 %s20, %s21
      %p209 = scmp.lt.s32.totalorder %s208, 1
      %s210 = scalar_select %p209, %s208, 1
      %s211 = smul.addr %s210, 2
      %s212 = scalar_lea.vmem %s4, %s211
      %p213 = scmp.lt.s32.totalorder %s20, 1
      %s214 = scalar_select %p213, %s20, 1
      %s215 = smul.addr %s214, 18
      %s216 = smul.addr %s215, 4
      %s217 = scalar_lea.vmem %s0, %s216
      %s218 = sadd.s32 %s20, %s21
      %p219 = scmp.lt.s32.totalorder %s218, 1
      %s220 = scalar_select %p219, %s218, 1
      %s221 = smul.addr %s220, 8
      %s222 = smul.addr %s221, 4
      %s223 = scalar_lea.vmem %s3, %s222
      %s224 = sadd.s32 %s20, %s21
      %s225 = sadd.s32 %s20, %s21
      %p226 = scmp.lt.s32.totalorder %s225, 1
      %s227 = scalar_select %p226, %s225, 1
      %s228 = smul.addr %s227, 2
      %s229 = scalar_lea.vmem %s4, %s228
      %s230 = sadd.s32 %s20, %s21
      %s232 = smul.u32 %s21, 64
      %s233 = sshra.s32 %s232, 3
      %s234 = sand.u32 %s232, 7
      %s235 = smul.addr %s233, 4
      %s236 = scalar_lea.vmem %s217, %s235
      %v237 = vld [vmem:[%s236] sm:$0xf]
      %v238 = vld [vmem:[%s236 + $0x4] sm:$0xf]
      %v239 = vld [vmem:[%s236 + $0x8] sm:$0xf]
      %v240 = vld [vmem:[%s236 + $0xc] sm:$0xf]
      %v241 = vld [vmem:[%s236 + $0x10] sm:$0xf]
      %v242 = vld [vmem:[%s236 + $0x14] sm:$0xf]
      %v243 = vld [vmem:[%s236 + $0x18] sm:$0xf]
      %v244 = vld [vmem:[%s236 + $0x1c] sm:$0xf]
      %v245 = vld [vmem:[%s1] sm:$0xf]
      %v246 = vld [vmem:[%s1 + $0x4] sm:$0xf]
      %v247 = vld [vmem:[%s1 + $0x8] sm:$0xf]
      %v248 = vld [vmem:[%s1 + $0xc] sm:$0xf]
      %v249 = vld [vmem:[%s1 + $0x10] sm:$0xf]
      %v250 = vld [vmem:[%s1 + $0x14] sm:$0xf]
      %v251 = vld [vmem:[%s1 + $0x18] sm:$0xf]
      %v252 = vld [vmem:[%s1 + $0x1c] sm:$0xf]
      %v253 = vld [vmem:[%s1 + $0x20] sm:$0xf]
      %v254 = vld [vmem:[%s1 + $0x24] sm:$0xf]
      %v255 = vld [vmem:[%s1 + $0x28] sm:$0xf]
      %v256 = vld [vmem:[%s1 + $0x2c] sm:$0xf]
      %v257 = vld [vmem:[%s1 + $0x30] sm:$0xf]
      %v258 = vld [vmem:[%s1 + $0x34] sm:$0xf]
      %v259 = vld [vmem:[%s1 + $0x38] sm:$0xf]
      %v260 = vld [vmem:[%s1 + $0x3c] sm:$0xf]
      %s261 = sadd.s32 %s233, 9
      %s262 = smul.addr %s261, 4
      %s263 = scalar_lea.vmem %s217, %s262
      %v264 = vld [vmem:[%s263] sm:$0xf]
      %v265 = vld [vmem:[%s263 + $0x4] sm:$0xf]
      %v266 = vld [vmem:[%s263 + $0x8] sm:$0xf]
      %v267 = vld [vmem:[%s263 + $0xc] sm:$0xf]
      %v268 = vld [vmem:[%s263 + $0x10] sm:$0xf]
      %v269 = vld [vmem:[%s263 + $0x14] sm:$0xf]
      %v270 = vld [vmem:[%s263 + $0x18] sm:$0xf]
      %v271 = vld [vmem:[%s263 + $0x1c] sm:$0xf]
      %s272 = scalar_lea.vmem %s1, 64
      %v273 = vld [vmem:[%s272] sm:$0xf]
      %v274 = vld [vmem:[%s272 + $0x4] sm:$0xf]
      %v275 = vld [vmem:[%s272 + $0x8] sm:$0xf]
      %v276 = vld [vmem:[%s272 + $0xc] sm:$0xf]
      %v277 = vld [vmem:[%s272 + $0x10] sm:$0xf]
      %v278 = vld [vmem:[%s272 + $0x14] sm:$0xf]
      %v279 = vld [vmem:[%s272 + $0x18] sm:$0xf]
      %v280 = vld [vmem:[%s272 + $0x1c] sm:$0xf]
      %v281 = vld [vmem:[%s272 + $0x20] sm:$0xf]
      %v282 = vld [vmem:[%s272 + $0x24] sm:$0xf]
      %v283 = vld [vmem:[%s272 + $0x28] sm:$0xf]
      %v284 = vld [vmem:[%s272 + $0x2c] sm:$0xf]
      %v285 = vld [vmem:[%s272 + $0x30] sm:$0xf]
      %v286 = vld [vmem:[%s272 + $0x34] sm:$0xf]
      %v287 = vld [vmem:[%s272 + $0x38] sm:$0xf]
      %v288 = vld [vmem:[%s272 + $0x3c] sm:$0xf]
      %v297 = vunpack.c.l.b16 %v264
      %v298 = vunpack.c.l.b16 %v265
      %v299 = vunpack.c.l.b16 %v266
      %v300 = vunpack.c.l.b16 %v267
      %v301 = vunpack.c.l.b16 %v268
      %v302 = vunpack.c.l.b16 %v269
      %v303 = vunpack.c.l.b16 %v270
      %v304 = vunpack.c.l.b16 %v271
      %v305 = vpack.c.b16 %v298, %v297
      %v306 = vpack.c.b16 %v300, %v299
      %v307 = vpack.c.b16 %v302, %v301
      %v308 = vpack.c.b16 %v304, %v303
      %v329 = vunpack.c.l.b16 %v273
      %v330 = vunpack.c.l.b16 %v274
      %v331 = vunpack.c.l.b16 %v275
      %v332 = vunpack.c.l.b16 %v276
      %v333 = vunpack.c.l.b16 %v277
      %v334 = vunpack.c.l.b16 %v278
      %v335 = vunpack.c.l.b16 %v279
      %v336 = vunpack.c.l.b16 %v280
      %v337 = vunpack.c.l.b16 %v281
      %v338 = vunpack.c.l.b16 %v282
      %v339 = vunpack.c.l.b16 %v283
      %v340 = vunpack.c.l.b16 %v284
      %v341 = vunpack.c.l.b16 %v285
      %v342 = vunpack.c.l.b16 %v286
      %v343 = vunpack.c.l.b16 %v287
      %v344 = vunpack.c.l.b16 %v288
      %v345 = vpack.c.b16 %v330, %v329
      %v346 = vpack.c.b16 %v332, %v331
      %v347 = vpack.c.b16 %v334, %v333
      %v348 = vpack.c.b16 %v336, %v335
      %v349 = vpack.c.b16 %v338, %v337
      %v350 = vpack.c.b16 %v340, %v339
      %v351 = vpack.c.b16 %v342, %v341
      %v352 = vpack.c.b16 %v344, %v343
      %361 = vmatprep.subr.bf16.mxu0 0
      %362 = vmatpush1.bf16.msra.mxu0 %v352
      %363 = vmatprep.subr.bf16.mxu0 0
      %364 = vmatpush1.bf16.msra.mxu0 %v351
      %365 = vmatprep.subr.bf16.mxu0 0
      %366 = vmatpush1.bf16.msra.mxu0 %v350
      %367 = vmatprep.subr.bf16.mxu0 0
      %368 = vmatpush1.bf16.msra.mxu0 %v349
      %369 = vmatprep.subr.bf16.mxu0 0
      %370 = vmatpush1.bf16.msra.mxu0 %v348
      %371 = vmatprep.subr.bf16.mxu0 0
      %372 = vmatpush1.bf16.msra.mxu0 %v347
      %373 = vmatprep.subr.bf16.mxu0 0
      %374 = vmatpush1.bf16.msra.mxu0 %v346
      %375 = vmatprep.subr.bf16.mxu0 0
      %376 = vmatpush1.bf16.msra.mxu0 %v345
      %377 = vmatprep.subr.bf16.mxu0 0
      %378 = vmatpush2.bf16.msra.mxu0 0
      %379 = vmatprep.subr.bf16.mxu0 0
      %380 = vmatpush2.bf16.msra.mxu0 0
      %381 = vmatprep.subr.bf16.mxu0 0
      %382 = vmatpush2.bf16.msra.mxu0 0
      %383 = vmatprep.subr.bf16.mxu0 0
      %384 = vmatpush2.bf16.msra.mxu0 0
      %385 = vmatprep.subr.bf16.mxu0 0
      %386 = vmatpush2.bf16.msra.mxu0 0
      %387 = vmatprep.subr.bf16.mxu0 0
      %388 = vmatpush2.bf16.msra.mxu0 0
      %389 = vmatprep.subr.bf16.mxu0 0
      %390 = vmatpush2.bf16.msra.mxu0 0
      %391 = vmatprep.subr.bf16.mxu0 0
      %392 = vmatpush2.bf16.msra.mxu0 0
      %393 = vmatprep.mubr.bf16.mxu0 0
      %394 = vmatmul.mubr.bf16.gmra.mxu0 %v305
      %v395 = vpop.f32.mrf.mxu0
      %v396 = vadd.f32 0.0, %v395
      %v397 = vpop.f32.mrf.mxu0
      %v398 = vpop.f32.mrf.mxu0
      %v399 = vadd.f32 0.0, %v398
      %v400 = vpop.f32.mrf.mxu0
      %401 = vmatprep.mubr.bf16.mxu0 0
      %402 = vmatmul.mubr.bf16.gmra.mxu0 %v306
      %v403 = vpop.f32.mrf.mxu0
      %v404 = vadd.f32 0.0, %v403
      %v405 = vpop.f32.mrf.mxu0
      %v406 = vpop.f32.mrf.mxu0
      %v407 = vadd.f32 0.0, %v406
      %v408 = vpop.f32.mrf.mxu0
      %409 = vmatprep.mubr.bf16.mxu0 0
      %410 = vmatmul.mubr.bf16.gmra.mxu0 %v307
      %v411 = vpop.f32.mrf.mxu0
      %v412 = vadd.f32 0.0, %v411
      %v413 = vpop.f32.mrf.mxu0
      %v414 = vpop.f32.mrf.mxu0
      %v415 = vadd.f32 0.0, %v414
      %v416 = vpop.f32.mrf.mxu0
      %417 = vmatprep.mubr.bf16.mxu0 0
      %418 = vmatmul.mubr.bf16.gmra.mxu0 %v308
      %v419 = vpop.f32.mrf.mxu0
      %v420 = vadd.f32 0.0, %v419
      %v421 = vpop.f32.mrf.mxu0
      %v422 = vpop.f32.mrf.mxu0
      %v423 = vadd.f32 0.0, %v422
      %v424 = vpop.f32.mrf.mxu0
      %425 = vdwg.mxu0
      %v434 = vunpack.c.l.b16 %v237
      %v435 = vunpack.c.l.b16 %v238
      %v436 = vunpack.c.l.b16 %v239
      %v437 = vunpack.c.l.b16 %v240
      %v438 = vunpack.c.l.b16 %v241
      %v439 = vunpack.c.l.b16 %v242
      %v440 = vunpack.c.l.b16 %v243
      %v441 = vunpack.c.l.b16 %v244
      %v442 = vpack.c.b16 %v435, %v434
      %v443 = vpack.c.b16 %v437, %v436
      %v444 = vpack.c.b16 %v439, %v438
      %v445 = vpack.c.b16 %v441, %v440
      %v466 = vunpack.c.l.b16 %v245
      %v467 = vunpack.c.l.b16 %v246
      %v468 = vunpack.c.l.b16 %v247
      %v469 = vunpack.c.l.b16 %v248
      %v470 = vunpack.c.l.b16 %v249
      %v471 = vunpack.c.l.b16 %v250
      %v472 = vunpack.c.l.b16 %v251
      %v473 = vunpack.c.l.b16 %v252
      %v474 = vunpack.c.l.b16 %v253
      %v475 = vunpack.c.l.b16 %v254
      %v476 = vunpack.c.l.b16 %v255
      %v477 = vunpack.c.l.b16 %v256
      %v478 = vunpack.c.l.b16 %v257
      %v479 = vunpack.c.l.b16 %v258
      %v480 = vunpack.c.l.b16 %v259
      %v481 = vunpack.c.l.b16 %v260
      %v482 = vpack.c.b16 %v467, %v466
      %v483 = vpack.c.b16 %v469, %v468
      %v484 = vpack.c.b16 %v471, %v470
      %v485 = vpack.c.b16 %v473, %v472
      %v486 = vpack.c.b16 %v475, %v474
      %v487 = vpack.c.b16 %v477, %v476
      %v488 = vpack.c.b16 %v479, %v478
      %v489 = vpack.c.b16 %v481, %v480
      %498 = vmatprep.subr.bf16.mxu0 0
      %499 = vmatpush1.bf16.msra.mxu0 %v489
      %500 = vmatprep.subr.bf16.mxu0 0
      %501 = vmatpush1.bf16.msra.mxu0 %v488
      %502 = vmatprep.subr.bf16.mxu0 0
      %503 = vmatpush1.bf16.msra.mxu0 %v487
      %504 = vmatprep.subr.bf16.mxu0 0
      %505 = vmatpush1.bf16.msra.mxu0 %v486
      %506 = vmatprep.subr.bf16.mxu0 0
      %507 = vmatpush1.bf16.msra.mxu0 %v485
      %508 = vmatprep.subr.bf16.mxu0 0
      %509 = vmatpush1.bf16.msra.mxu0 %v484
      %510 = vmatprep.subr.bf16.mxu0 0
      %511 = vmatpush1.bf16.msra.mxu0 %v483
      %512 = vmatprep.subr.bf16.mxu0 0
      %513 = vmatpush1.bf16.msra.mxu0 %v482
      %514 = vmatprep.subr.bf16.mxu0 0
      %515 = vmatpush2.bf16.msra.mxu0 0
      %516 = vmatprep.subr.bf16.mxu0 0
      %517 = vmatpush2.bf16.msra.mxu0 0
      %518 = vmatprep.subr.bf16.mxu0 0
      %519 = vmatpush2.bf16.msra.mxu0 0
      %520 = vmatprep.subr.bf16.mxu0 0
      %521 = vmatpush2.bf16.msra.mxu0 0
      %522 = vmatprep.subr.bf16.mxu0 0
      %523 = vmatpush2.bf16.msra.mxu0 0
      %524 = vmatprep.subr.bf16.mxu0 0
      %525 = vmatpush2.bf16.msra.mxu0 0
      %526 = vmatprep.subr.bf16.mxu0 0
      %527 = vmatpush2.bf16.msra.mxu0 0
      %528 = vmatprep.subr.bf16.mxu0 0
      %529 = vmatpush2.bf16.msra.mxu0 0
      %530 = vmatprep.mubr.bf16.mxu0 0
      %531 = vmatmul.mubr.bf16.gmra.mxu0 %v442
      %v532 = vpop.f32.mrf.mxu0
      %v533 = vadd.f32 %v396, %v532
      %v534 = vpop.f32.mrf.mxu0
      %v535 = vpop.f32.mrf.mxu0
      %v536 = vadd.f32 %v399, %v535
      %v537 = vpop.f32.mrf.mxu0
      %538 = vmatprep.mubr.bf16.mxu0 0
      %539 = vmatmul.mubr.bf16.gmra.mxu0 %v443
      %v540 = vpop.f32.mrf.mxu0
      %v541 = vadd.f32 %v404, %v540
      %v542 = vpop.f32.mrf.mxu0
      %v543 = vpop.f32.mrf.mxu0
      %v544 = vadd.f32 %v407, %v543
      %v545 = vpop.f32.mrf.mxu0
      %546 = vmatprep.mubr.bf16.mxu0 0
      %547 = vmatmul.mubr.bf16.gmra.mxu0 %v444
      %v548 = vpop.f32.mrf.mxu0
      %v549 = vadd.f32 %v412, %v548
      %v550 = vpop.f32.mrf.mxu0
      %v551 = vpop.f32.mrf.mxu0
      %v552 = vadd.f32 %v415, %v551
      %v553 = vpop.f32.mrf.mxu0
      %554 = vmatprep.mubr.bf16.mxu0 0
      %555 = vmatmul.mubr.bf16.gmra.mxu0 %v445
      %v556 = vpop.f32.mrf.mxu0
      %v557 = vadd.f32 %v420, %v556
      %v558 = vpop.f32.mrf.mxu0
      %v559 = vpop.f32.mrf.mxu0
      %v560 = vadd.f32 %v423, %v559
      %v561 = vpop.f32.mrf.mxu0
      %562 = vdwg.mxu0
      %s563 = smul.u32 %s21, 8
      %s564 = sadd.s32 %s563, 1
      %s565 = smul.u32 %s564, 8
      %s566 = sshra.s32 %s565, 3
      %s567 = sand.u32 %s565, 7
      %s568 = smul.addr %s566, 4
      %s569 = scalar_lea.vmem %s217, %s568
      %v570 = vld [vmem:[%s569] sm:$0xf]
      %v571 = vld [vmem:[%s569 + $0x4] sm:$0xf]
      %v572 = vld [vmem:[%s569 + $0x8] sm:$0xf]
      %v573 = vld [vmem:[%s569 + $0xc] sm:$0xf]
      %v574 = vld [vmem:[%s569 + $0x10] sm:$0xf]
      %v575 = vld [vmem:[%s569 + $0x14] sm:$0xf]
      %v576 = vld [vmem:[%s569 + $0x18] sm:$0xf]
      %v577 = vld [vmem:[%s569 + $0x1c] sm:$0xf]
      %s578 = scalar_lea.vmem %s1, 128
      %v579 = vld [vmem:[%s578] sm:$0xf]
      %v580 = vld [vmem:[%s578 + $0x4] sm:$0xf]
      %v581 = vld [vmem:[%s578 + $0x8] sm:$0xf]
      %v582 = vld [vmem:[%s578 + $0xc] sm:$0xf]
      %v583 = vld [vmem:[%s578 + $0x10] sm:$0xf]
      %v584 = vld [vmem:[%s578 + $0x14] sm:$0xf]
      %v585 = vld [vmem:[%s578 + $0x18] sm:$0xf]
      %v586 = vld [vmem:[%s578 + $0x1c] sm:$0xf]
      %v587 = vld [vmem:[%s578 + $0x20] sm:$0xf]
      %v588 = vld [vmem:[%s578 + $0x24] sm:$0xf]
      %v589 = vld [vmem:[%s578 + $0x28] sm:$0xf]
      %v590 = vld [vmem:[%s578 + $0x2c] sm:$0xf]
      %v591 = vld [vmem:[%s578 + $0x30] sm:$0xf]
      %v592 = vld [vmem:[%s578 + $0x34] sm:$0xf]
      %v593 = vld [vmem:[%s578 + $0x38] sm:$0xf]
      %v594 = vld [vmem:[%s578 + $0x3c] sm:$0xf]
      %v603 = vunpack.c.l.b16 %v570
      %v604 = vunpack.c.l.b16 %v571
      %v605 = vunpack.c.l.b16 %v572
      %v606 = vunpack.c.l.b16 %v573
      %v607 = vunpack.c.l.b16 %v574
      %v608 = vunpack.c.l.b16 %v575
      %v609 = vunpack.c.l.b16 %v576
      %v610 = vunpack.c.l.b16 %v577
      %v611 = vpack.c.b16 %v604, %v603
      %v612 = vpack.c.b16 %v606, %v605
      %v613 = vpack.c.b16 %v608, %v607
      %v614 = vpack.c.b16 %v610, %v609
      %v635 = vunpack.c.l.b16 %v579
      %v636 = vunpack.c.l.b16 %v580
      %v637 = vunpack.c.l.b16 %v581
      %v638 = vunpack.c.l.b16 %v582
      %v639 = vunpack.c.l.b16 %v583
      %v640 = vunpack.c.l.b16 %v584
      %v641 = vunpack.c.l.b16 %v585
      %v642 = vunpack.c.l.b16 %v586
      %v643 = vunpack.c.l.b16 %v587
      %v644 = vunpack.c.l.b16 %v588
      %v645 = vunpack.c.l.b16 %v589
      %v646 = vunpack.c.l.b16 %v590
      %v647 = vunpack.c.l.b16 %v591
      %v648 = vunpack.c.l.b16 %v592
      %v649 = vunpack.c.l.b16 %v593
      %v650 = vunpack.c.l.b16 %v594
      %v651 = vpack.c.b16 %v636, %v635
      %v652 = vpack.c.b16 %v638, %v637
      %v653 = vpack.c.b16 %v640, %v639
      %v654 = vpack.c.b16 %v642, %v641
      %v655 = vpack.c.b16 %v644, %v643
      %v656 = vpack.c.b16 %v646, %v645
      %v657 = vpack.c.b16 %v648, %v647
      %v658 = vpack.c.b16 %v650, %v649
      %667 = vmatprep.subr.bf16.mxu0 0
      %668 = vmatpush1.bf16.msra.mxu0 %v658
      %669 = vmatprep.subr.bf16.mxu0 0
      %670 = vmatpush1.bf16.msra.mxu0 %v657
      %671 = vmatprep.subr.bf16.mxu0 0
      %672 = vmatpush1.bf16.msra.mxu0 %v656
      %673 = vmatprep.subr.bf16.mxu0 0
      %674 = vmatpush1.bf16.msra.mxu0 %v655
      %675 = vmatprep.subr.bf16.mxu0 0
      %676 = vmatpush1.bf16.msra.mxu0 %v654
      %677 = vmatprep.subr.bf16.mxu0 0
      %678 = vmatpush1.bf16.msra.mxu0 %v653
      %679 = vmatprep.subr.bf16.mxu0 0
      %680 = vmatpush1.bf16.msra.mxu0 %v652
      %681 = vmatprep.subr.bf16.mxu0 0
      %682 = vmatpush1.bf16.msra.mxu0 %v651
      %683 = vmatprep.subr.bf16.mxu0 0
      %684 = vmatpush2.bf16.msra.mxu0 0
      %685 = vmatprep.subr.bf16.mxu0 0
      %686 = vmatpush2.bf16.msra.mxu0 0
      %687 = vmatprep.subr.bf16.mxu0 0
      %688 = vmatpush2.bf16.msra.mxu0 0
      %689 = vmatprep.subr.bf16.mxu0 0
      %690 = vmatpush2.bf16.msra.mxu0 0
      %691 = vmatprep.subr.bf16.mxu0 0
      %692 = vmatpush2.bf16.msra.mxu0 0
      %693 = vmatprep.subr.bf16.mxu0 0
      %694 = vmatpush2.bf16.msra.mxu0 0
      %695 = vmatprep.subr.bf16.mxu0 0
      %696 = vmatpush2.bf16.msra.mxu0 0
      %697 = vmatprep.subr.bf16.mxu0 0
      %698 = vmatpush2.bf16.msra.mxu0 0
      %699 = vmatprep.mubr.bf16.mxu0 0
      %700 = vmatmul.mubr.bf16.gmra.mxu0 %v611
      %v701 = vpop.f32.mrf.mxu0
      %v702 = vadd.f32 0.0, %v701
      %v703 = vpop.f32.mrf.mxu0
      %v704 = vpop.f32.mrf.mxu0
      %v705 = vadd.f32 0.0, %v704
      %v706 = vpop.f32.mrf.mxu0
      %707 = vmatprep.mubr.bf16.mxu0 0
      %708 = vmatmul.mubr.bf16.gmra.mxu0 %v612
      %v709 = vpop.f32.mrf.mxu0
      %v710 = vadd.f32 0.0, %v709
      %v711 = vpop.f32.mrf.mxu0
      %v712 = vpop.f32.mrf.mxu0
      %v713 = vadd.f32 0.0, %v712
      %v714 = vpop.f32.mrf.mxu0
      %715 = vmatprep.mubr.bf16.mxu0 0
      %716 = vmatmul.mubr.bf16.gmra.mxu0 %v613
      %v717 = vpop.f32.mrf.mxu0
      %v718 = vadd.f32 0.0, %v717
      %v719 = vpop.f32.mrf.mxu0
      %v720 = vpop.f32.mrf.mxu0
      %v721 = vadd.f32 0.0, %v720
      %v722 = vpop.f32.mrf.mxu0
      %723 = vmatprep.mubr.bf16.mxu0 0
      %724 = vmatmul.mubr.bf16.gmra.mxu0 %v614
      %v725 = vpop.f32.mrf.mxu0
      %v726 = vadd.f32 0.0, %v725
      %v727 = vpop.f32.mrf.mxu0
      %v728 = vpop.f32.mrf.mxu0
      %v729 = vadd.f32 0.0, %v728
      %v730 = vpop.f32.mrf.mxu0
      %731 = vdwg.mxu0
      %v732 = vadd.f32 %v533, %v702
      %v733 = vadd.f32 %v536, %v705
      %v734 = vadd.f32 %v541, %v710
      %v735 = vadd.f32 %v544, %v713
      %v736 = vadd.f32 %v549, %v718
      %v737 = vadd.f32 %v552, %v721
      %v738 = vadd.f32 %v557, %v726
      %v739 = vadd.f32 %v560, %v729
      %v740 = vld [vmem:[%s2] sm:$0x1]
      %v742 = vlaneseq
      %v743 = vshrl.u32 %v742, 7
      %v744 = vsub.s32 0, %v743
      %v745 = vrot.slane %v740, %v744
      %v747 = vadd.f32 %v732, %v745
      %v748 = vadd.f32 %v733, %v745
      %v749 = vadd.f32 %v734, %v745
      %v750 = vadd.f32 %v735, %v745
      %v751 = vadd.f32 %v736, %v745
      %v752 = vadd.f32 %v737, %v745
      %v753 = vadd.f32 %v738, %v745
      %v754 = vadd.f32 %v739, %v745
      %v755 = vmax.f32 %v747, 0.0
      %v756 = vmax.f32 %v748, 0.0
      %v757 = vmax.f32 %v749, 0.0
      %v758 = vmax.f32 %v750, 0.0
      %v759 = vmax.f32 %v751, 0.0
      %v760 = vmax.f32 %v752, 0.0
      %v761 = vmax.f32 %v753, 0.0
      %v762 = vmax.f32 %v754, 0.0
      %v763 = vpack.c.bf16 %v756, %v755
      %v764 = vpack.c.bf16 %v758, %v757
      %v765 = vpack.c.bf16 %v760, %v759
      %v766 = vpack.c.bf16 %v762, %v761
      %v771 = vunpack.c.l.b16 %v763
      %v772 = vunpack.c.h.b16 %v763
      %v773 = vunpack.c.l.b16 %v764
      %v774 = vunpack.c.h.b16 %v764
      %v775 = vunpack.c.l.b16 %v765
      %v776 = vunpack.c.h.b16 %v765
      %v777 = vunpack.c.l.b16 %v766
      %v778 = vunpack.c.h.b16 %v766
      %v779 = vpack.c.b16 %v771, %v771
      %v780 = vpack.c.b16 %v772, %v772
      %v781 = vpack.c.b16 %v773, %v773
      %v782 = vpack.c.b16 %v774, %v774
      %v783 = vpack.c.b16 %v775, %v775
      %v784 = vpack.c.b16 %v776, %v776
      %v785 = vpack.c.b16 %v777, %v777
      %v786 = vpack.c.b16 %v778, %v778
      %795 = vst [vmem:[%s223] sm:$0xf] %v779
      %796 = vst [vmem:[%s223 + $0x4] sm:$0xf] %v780
      %797 = vst [vmem:[%s223 + $0x8] sm:$0xf] %v781
      %798 = vst [vmem:[%s223 + $0xc] sm:$0xf] %v782
      %799 = vst [vmem:[%s223 + $0x10] sm:$0xf] %v783
      %800 = vst [vmem:[%s223 + $0x14] sm:$0xf] %v784
      %801 = vst [vmem:[%s223 + $0x18] sm:$0xf] %v785
      %802 = vst [vmem:[%s223 + $0x1c] sm:$0xf] %v786
      %p803 = scmp.eq.s32.totalorder %s21, 0
      %p804 = scmp.ne.s32.totalorder %s21, 0
      // Predicated region
      $region33: #{downsample_block.2} parent=31 // pred_check
        %p805 = pneg %p804
      $region34: #{downsample_block.2} parent=31 // pred_check_branch
        %807 = sbr.rel (%p805) target = $region36
      $region35: #{downsample_block.2} parent=31 // pred_region
        %v808 = vadd.f32 %v755, %v756
        %v809 = vadd.f32 %v808, %v757
        %v810 = vadd.f32 %v809, %v758
        %v811 = vadd.f32 %v810, %v759
        %v812 = vadd.f32 %v811, %v760
        %v813 = vadd.f32 %v812, %v761
        %v814 = vadd.f32 %v813, %v762
        %v815 = vrot.slane %v814, 4
        %v816 = vadd.f32 %v814, %v815
        %v817 = vrot.slane %v816, 2
        %v818 = vadd.f32 %v816, %v817
        %v819 = vrot.slane %v818, 1
        %v820 = vadd.f32 %v818, %v819
        %821 = vst [vmem:[%s229] sm:$0x1] %v820
        %v822 = vmul.f32 %v755, %v755
        %v823 = vmul.f32 %v756, %v756
        %v824 = vmul.f32 %v757, %v757
        %v825 = vmul.f32 %v758, %v758
        %v826 = vmul.f32 %v759, %v759
        %v827 = vmul.f32 %v760, %v760
        %v828 = vmul.f32 %v761, %v761
        %v829 = vmul.f32 %v762, %v762
        %v830 = vadd.f32 %v822, %v823
        %v831 = vadd.f32 %v830, %v824
        %v832 = vadd.f32 %v831, %v825
        %v833 = vadd.f32 %v832, %v826
        %v834 = vadd.f32 %v833, %v827
        %v835 = vadd.f32 %v834, %v828
        %v836 = vadd.f32 %v835, %v829
        %v837 = vrot.slane %v836, 4
        %v838 = vadd.f32 %v836, %v837
        %v839 = vrot.slane %v838, 2
        %v840 = vadd.f32 %v838, %v839
        %v841 = vrot.slane %v840, 1
        %v842 = vadd.f32 %v840, %v841
        %843 = vst [vmem:[%s229 + $0x1] sm:$0x1] %v842
      $region36: #{downsample_block.2} parent=31 // pred_fallthru
        _
      // Predicated region
      $region37: #{downsample_block.2} parent=31 // pred_check
        %p844 = pneg %p803
      $region38: #{downsample_block.2} parent=31 // pred_check_branch
        %846 = sbr.rel (%p844) target = $region40
      $region39: #{downsample_block.2} parent=31 // pred_region
        %s847 = ssub.s32 8, %s563
        %s848 = smul.u32 %s847, 8
        %v849 = vlaneseq
        %v850 = vshrl.u32 %v849, 7
        %v851 = vadd.s32 %v850, 8
        %v852 = vadd.s32 %v850, 16
        %v853 = vadd.s32 %v850, 24
        %v854 = vadd.s32 %v850, 32
        %v855 = vadd.s32 %v850, 40
        %v856 = vadd.s32 %v850, 48
        %v857 = vadd.s32 %v850, 56
        %v858 = vstv %s848
        %vm859 = vcmp.lt.s32.totalorder %v850, %v858
        %vm860 = vcmp.lt.s32.totalorder %v851, %v858
        %vm861 = vcmp.lt.s32.totalorder %v852, %v858
        %vm862 = vcmp.lt.s32.totalorder %v853, %v858
        %vm863 = vcmp.lt.s32.totalorder %v854, %v858
        %vm864 = vcmp.lt.s32.totalorder %v855, %v858
        %vm865 = vcmp.lt.s32.totalorder %v856, %v858
        %vm866 = vcmp.lt.s32.totalorder %v857, %v858
        %v867 = vsel %vm859, 1, 0
        %v868 = vsel %vm860, 1, 0
        %v869 = vsel %vm861, 1, 0
        %v870 = vsel %vm862, 1, 0
        %v871 = vsel %vm863, 1, 0
        %v872 = vsel %vm864, 1, 0
        %v873 = vsel %vm865, 1, 0
        %v874 = vsel %vm866, 1, 0
        %vm875 = vcmp.eq.s32.totalorder %v867, 1
        %vm876 = vcmp.eq.s32.totalorder %v868, 1
        %vm877 = vcmp.eq.s32.totalorder %v869, 1
        %vm878 = vcmp.eq.s32.totalorder %v870, 1
        %vm879 = vcmp.eq.s32.totalorder %v871, 1
        %vm880 = vcmp.eq.s32.totalorder %v872, 1
        %vm881 = vcmp.eq.s32.totalorder %v873, 1
        %vm882 = vcmp.eq.s32.totalorder %v874, 1
        %v883 = vsel %vm875, %v755, 0.0
        %v884 = vsel %vm876, %v756, 0.0
        %v885 = vsel %vm877, %v757, 0.0
        %v886 = vsel %vm878, %v758, 0.0
        %v887 = vsel %vm879, %v759, 0.0
        %v888 = vsel %vm880, %v760, 0.0
        %v889 = vsel %vm881, %v761, 0.0
        %v890 = vsel %vm882, %v762, 0.0
        %v891 = vadd.f32 %v883, %v884
        %v892 = vadd.f32 %v891, %v885
        %v893 = vadd.f32 %v892, %v886
        %v894 = vadd.f32 %v893, %v887
        %v895 = vadd.f32 %v894, %v888
        %v896 = vadd.f32 %v895, %v889
        %v897 = vadd.f32 %v896, %v890
        %v898 = vrot.slane %v897, 4
        %v899 = vadd.f32 %v897, %v898
        %v900 = vrot.slane %v899, 2
        %v901 = vadd.f32 %v899, %v900
        %v902 = vrot.slane %v901, 1
        %v903 = vadd.f32 %v901, %v902
        %904 = vst [vmem:[%s229] sm:$0x1] %v903
        %v905 = vmul.f32 %v883, %v883
        %v906 = vmul.f32 %v884, %v884
        %v907 = vmul.f32 %v885, %v885
        %v908 = vmul.f32 %v886, %v886
        %v909 = vmul.f32 %v887, %v887
        %v910 = vmul.f32 %v888, %v888
        %v911 = vmul.f32 %v889, %v889
        %v912 = vmul.f32 %v890, %v890
        %v913 = vadd.f32 %v905, %v906
        %v914 = vadd.f32 %v913, %v907
        %v915 = vadd.f32 %v914, %v908
        %v916 = vadd.f32 %v915, %v909
        %v917 = vadd.f32 %v916, %v910
        %v918 = vadd.f32 %v917, %v911
        %v919 = vadd.f32 %v918, %v912
        %v920 = vrot.slane %v919, 4
        %v921 = vadd.f32 %v919, %v920
        %v922 = vrot.slane %v921, 2
        %v923 = vadd.f32 %v921, %v922
        %v924 = vrot.slane %v923, 1
        %v925 = vadd.f32 %v923, %v924
        %926 = vst [vmem:[%s229 + $0x1] sm:$0x1] %v925
      $region40: #{downsample_block.2} parent=31 // pred_fallthru
        _
      %s927 = sadd.s32 %s20, %s21
      %p928 = scmp.lt.s32.totalorder %s927, 1
      %s929 = scalar_select %p928, %s927, 1
      %s930 = smul.addr %s929, 8
      %s931 = smul.addr %s930, 4
      %s932 = scalar_lea.vmem %s3, %s931
      %s933 = sadd.s32 %s20, %s21
      %p934 = scmp.lt.s32.totalorder %s933, 1
      %s935 = scalar_select %p934, %s933, 1
      %s936 = smul.addr %s935, 2
      %s937 = scalar_lea.vmem %s4, %s936
      // Predicated region
      $region41: #{downsample_block.2} parent=31 // pred_check
        %p938 = pneg %p116
      $region42: #{downsample_block.2} parent=31 // pred_check_branch
        %940 = sbr.rel (%p938) target = $region44
      $region43: #{downsample_block.2} parent=31 // pred_region
        %s941 = sadd.s32 %s20, %s21
      $region44: #{downsample_block.2} parent=31 // pred_fallthru
        _
      // Predicated region
      $region45: #{downsample_block.2} parent=31 // pred_check
        %p942 = pneg %p144
      $region46: #{downsample_block.2} parent=31 // pred_check_branch
        %944 = sbr.rel (%p942) target = $region48
      $region47: #{downsample_block.2} parent=31 // pred_region
        %s945 = sadd.s32 %s20, %s21
      $region48: #{downsample_block.2} parent=31 // pred_fallthru
        _
    $region32: #{downsample_block.2} parent=5 // pred_fallthru
      _
    %p946 = scmp.le.s32.totalorder 2, %s11
    // Predicated region
    $region49: #{downsample_block.2} parent=5 // pred_check
      %p947 = pneg %p946
    $region50: #{downsample_block.2} parent=5 // pred_check_branch
      %949 = sbr.rel (%p947) target = $region52
    $region51: #{downsample_block.2} parent=5 // pred_region
      %s950 = ssub.s32 %s11, 2
      // Predicated region
      $region53: #{downsample_block.2} parent=51 // pred_check
        %p951 = pneg %p122
      $region54: #{downsample_block.2} parent=51 // pred_check_branch
        %953 = sbr.rel (%p951) target = $region56
      $region55: #{downsample_block.2} parent=51 // pred_region
        %s954 = sadd.s32 %s22, %s23
        %p955 = scmp.lt.s32.totalorder %s954, 1
        %s956 = scalar_select %p955, %s954, 1
        %s957 = smul.addr %s956, 8
        %s958 = smul.addr %s957, 4
        %s959 = scalar_lea.vmem %s3, %s958
      $region56: #{downsample_block.2} parent=51 // pred_fallthru
        _
      // Predicated region
      $region57: #{downsample_block.2} parent=51 // pred_check
        %p960 = pneg %p150
      $region58: #{downsample_block.2} parent=51 // pred_check_branch
        %962 = sbr.rel (%p960) target = $region60
      $region59: #{downsample_block.2} parent=51 // pred_region
        %s963 = sadd.s32 %s22, %s23
        %p964 = scmp.lt.s32.totalorder %s963, 1
        %s965 = scalar_select %p964, %s963, 1
        %s966 = smul.addr %s965, 2
        %s967 = scalar_lea.vmem %s4, %s966
      $region60: #{downsample_block.2} parent=51 // pred_fallthru
        _
    $region52: #{downsample_block.2} parent=5 // pred_fallthru
      _
  $region6: #{downsample_block.2} parent=0 // loop_footer
    %s15 = sadd.s32 1, %s11
  $region7: #{downsample_block.2} parent=0 // loop_footer_branch
    %10 = sbr.rel target = $region3
  $region8: #{downsample_block.2} parent=0 // loop_exit
    _

</llo_original>
